<compile_context>
chip_gen: v7x
topology: tpu7x:2x2x1
jax: 0.10.0
libtpu: 0.0.40
codegen_flags: <defaults>
</compile_context>

<pallas_src>
import jax
import jax.numpy as jnp
from jax.experimental import pallas as pl
from jax.experimental.pallas import tpu as pltpu

NEG_SLOPE = 0.2     # LeakyReLU negative slope
BN_EPS = 1e-5       # PyTorch BatchNorm2d default eps
NB_DIGITS = 10


def _round_up(x, m):
    return (x + m - 1) // m * m


def _ceil_div(a, b):
    return -(-a // b)


# ----------------------------------------------------------------------------
# Generation-aware VMEM sizing (v5e/v6e: 128 MiB physical, v7x: 64 MiB).
# ----------------------------------------------------------------------------
def _tpu_vmem_capacity_bytes():
    try:
        info = pltpu.get_tpu_info()
        cap = getattr(info, "vmem_capacity_bytes", None)
        if cap:
            return int(cap)
    except Exception:
        pass
    return 64 * 1024 * 1024   # conservative default (v7x-sized)


_VMEM_PHYS = _tpu_vmem_capacity_bytes()
VMEM_LIMIT_BYTES = min(96 * 1024 * 1024, _VMEM_PHYS * 3 // 4)

if _VMEM_PHYS >= 100 * 1024 * 1024:
    _TM_CAPS = (8192, 4096, 2048)    # v5e / v6e (128 MiB physical VMEM)
else:
    _TM_CAPS = (4096, 2048, 1024)    # v7x (64 MiB physical VMEM)


def _choose_tm(m, k):
    """M-tile size: multiple of 16 (bf16 sublane packing), <= generation cap,
    chosen so round_up(m, tm) wastes at most ~16 rows per tile (fixes the
    M = cap+1 near-2x padding pathology)."""
    if k <= 256:
        cap = _TM_CAPS[0]
    elif k <= 1024:
        cap = _TM_CAPS[1]
    else:
        cap = _TM_CAPS[2]
    m16 = _round_up(m, 16)
    if m16 <= cap:
        return m16
    n_tiles = _ceil_div(m16, cap)
    return _round_up(_ceil_div(m16, n_tiles), 16)


# ----------------------------------------------------------------------------
# Pass 1: matmul (bf16 MXU, f32 acc) + per-tile partial sum / sum-of-squares.
# Stats are written as one (8, Coutp) block per tile (row 0 = sum, row 1 =
# ssq) so the grid axis carries no cross-tile dependency -> "parallel".
# ----------------------------------------------------------------------------
def _matmul_stats_kernel(p_ref, w_ref, y_ref, stat_ref):
    y = jnp.dot(p_ref[...], w_ref[...], preferred_element_type=jnp.float32)
    y_ref[...] = y.astype(y_ref.dtype)                       # bf16 store
    s = jnp.sum(y, axis=0, keepdims=True)                    # (1, Coutp) f32
    q = jnp.sum(y * y, axis=0, keepdims=True)                # (1, Coutp) f32
    rows = jax.lax.broadcasted_iota(jnp.int32, stat_ref.shape, 0)
    stat_ref[...] = (jnp.where(rows == 0, s, 0.0)
                     + jnp.where(rows == 1, q, 0.0))


def conv_matmul_stats(patches_bf16, wmat_bf16, tm):
    mp, k = patches_bf16.shape
    coutp = wmat_bf16.shape[1]
    num_tiles = mp // tm
    return pl.pallas_call(
        _matmul_stats_kernel,
        out_shape=(
            jax.ShapeDtypeStruct((mp, coutp), jnp.bfloat16),        # y (bf16)
            jax.ShapeDtypeStruct((num_tiles * 8, coutp), jnp.float32),  # stats
        ),
        grid=(num_tiles,),
        in_specs=[
            pl.BlockSpec((tm, k), lambda i: (i, 0)),
            pl.BlockSpec((k, coutp), lambda i: (0, 0)),
        ],
        out_specs=(
            pl.BlockSpec((tm, coutp), lambda i: (i, 0)),
            pl.BlockSpec((8, coutp), lambda i: (i, 0)),
        ),
        compiler_params=pltpu.CompilerParams(
            dimension_semantics=("parallel",),    # no cross-tile dep -> megacore OK
            vmem_limit_bytes=VMEM_LIMIT_BYTES,
        ),
    )(patches_bf16, wmat_bf16)


# ----------------------------------------------------------------------------
# Pass 2: affine normalize (precomputed scale/shift) + LeakyReLU(0.2), bf16 io.
# ----------------------------------------------------------------------------
def _bn_lrelu_kernel(y_ref, scale_ref, shift_ref, o_ref):
    y = y_ref[...].astype(jnp.float32) * scale_ref[...] + shift_ref[...]
    o_ref[...] = jnp.where(y > 0, y, NEG_SLOPE * y).astype(o_ref.dtype)


def bn_lrelu(y_bf16, scale, shift, tm):
    mp, coutp = y_bf16.shape
    grid = (mp // tm,)
    return pl.pallas_call(
        _bn_lrelu_kernel,
        out_shape=jax.ShapeDtypeStruct((mp, coutp), jnp.bfloat16),
        grid=grid,
        in_specs=[
            pl.BlockSpec((tm, coutp), lambda i: (i, 0)),
            pl.BlockSpec((1, coutp), lambda i: (0, 0)),
            pl.BlockSpec((1, coutp), lambda i: (0, 0)),
        ],
        out_specs=pl.BlockSpec((tm, coutp), lambda i: (i, 0)),
        compiler_params=pltpu.CompilerParams(
            dimension_semantics=("parallel",),
            vmem_limit_bytes=VMEM_LIMIT_BYTES,
        ),
    )(y_bf16, scale, shift)


# ----------------------------------------------------------------------------
# Last layer: matmul + bias only (no BN / activation), f32 output.
# ----------------------------------------------------------------------------
def _matmul_bias_kernel(p_ref, w_ref, b_ref, o_ref):
    y = jnp.dot(p_ref[...], w_ref[...], preferred_element_type=jnp.float32)
    o_ref[...] = y + b_ref[...]


def conv_bias(patches_bf16, wmat_bf16, bias, tm):
    mp, k = patches_bf16.shape
    coutp = wmat_bf16.shape[1]
    grid = (mp // tm,)
    return pl.pallas_call(
        _matmul_bias_kernel,
        out_shape=jax.ShapeDtypeStruct((mp, coutp), jnp.float32),
        grid=grid,
        in_specs=[
            pl.BlockSpec((tm, k), lambda i: (i, 0)),
            pl.BlockSpec((k, coutp), lambda i: (0, 0)),
            pl.BlockSpec((1, coutp), lambda i: (0, 0)),
        ],
        out_specs=pl.BlockSpec((tm, coutp), lambda i: (i, 0)),
        compiler_params=pltpu.CompilerParams(
            dimension_semantics=("parallel",),
            vmem_limit_bytes=VMEM_LIMIT_BYTES,
        ),
    )(patches_bf16, wmat_bf16, bias)


# ----------------------------------------------------------------------------
# JAX glue: im2col patch extraction (NHWC, bf16), parameter init, forward.
# ----------------------------------------------------------------------------
def im2col(x, k, s, p):
    """x: [N, H, W, C] -> ([N*Ho*Wo, k*k*C], (N, Ho, Wo)). Patch order (di,dj,c)."""
    N, H, W, C = x.shape
    xp = jnp.pad(x, ((0, 0), (p, p), (p, p), (0, 0)))
    Hp, Wp = H + 2 * p, W + 2 * p
    ho = (Hp - k) // s + 1
    wo = (Wp - k) // s + 1
    cols = []
    for di in range(k):
        for dj in range(k):
            cols.append(xp[:, di: di + s * (ho - 1) + 1: s,
                            dj: dj + s * (wo - 1) + 1: s, :])
    pat = jnp.concatenate(cols, axis=-1)              # [N, ho, wo, k*k*C]
    return pat.reshape(N * ho * wo, k * k * C), (N, ho, wo)


# (cin, cout, kernel) ; strides/padding handled in LAYER_CFG
LAYER_SHAPES = [(1 + NB_DIGITS, 64, 4), (64, 128, 4), (128, 256, 4), (256, 2, 3)]
LAYER_CFG = [(4, 2, 2), (4, 4, 2), (4, 4, 2), (3, 2, 1)]   # (kernel, stride, pad)


def init_params(key):
    """Deterministic init mimicking PyTorch defaults (uniform +-1/sqrt(fan_in);
    BN gamma=1, beta=0). Weights stored HWIO: [kh, kw, cin, cout]."""
    params = []
    for (cin, cout, k) in LAYER_SHAPES:
        key, kw, kb = jax.random.split(key, 3)
        fan_in = cin * k * k
        bound = 1.0 / (fan_in ** 0.5)
        w = jax.random.uniform(kw, (k, k, cin, cout), jnp.float32, -bound, bound)
        b = jax.random.uniform(kb, (cout,), jnp.float32, -bound, bound)
        gamma = jnp.ones((cout,), jnp.float32)
        beta = jnp.zeros((cout,), jnp.float32)
        params.append((w, b, gamma, beta))
    return params


def conditional_discriminator(x_nchw, digits, params):
    """x_nchw: [N, 1, H, W] float32, digits: [N] int32 -> [N, 2] float32."""
    N, _, H, W = x_nchw.shape
    # Activation lives in bf16 end-to-end (MXU operands are bf16 anyway).
    onehot = jax.nn.one_hot(digits, NB_DIGITS, dtype=jnp.bfloat16)        # [N, 10]
    cls = jnp.broadcast_to(onehot[:, :, None, None], (N, NB_DIGITS, H, W))
    x = jnp.concatenate([x_nchw.astype(jnp.bfloat16), cls], axis=1)       # [N, 11, H, W]
    x = jnp.transpose(x, (0, 2, 3, 1))                                    # NHWC, bf16

    n_layers = len(LAYER_CFG)
    for i, ((k, s, p), (w, b, gamma, beta)) in enumerate(zip(LAYER_CFG, params)):
        patches, (n, ho, wo) = im2col(x, k, s, p)       # bf16 patches
        M, K = patches.shape
        cout = w.shape[-1]
        coutp = _round_up(cout, 128)            # lane-dense output (2->128, 64->128)
        tm = _choose_tm(M, K)
        Mp = _round_up(M, tm)                   # pad M so every grid tile is full

        patches_p = jnp.pad(patches, ((0, Mp - M), (0, 0)))
        wmat = w.reshape(k * k * w.shape[2], cout).astype(jnp.bfloat16)   # (di,dj,cin)->K
        wmat_p = jnp.pad(wmat, ((0, 0), (0, coutp - cout)))

        is_last = (i == n_layers - 1)
        if not is_last:
            # Conv bias is dropped: it is exactly cancelled by BN mean subtraction.
            # (Padded M rows contribute zero to the stats ONLY because of this.)
            y_bf16, stats = conv_matmul_stats(patches_p, wmat_p, tm)
            stats = stats.reshape(-1, 8, coutp)
            csum = jnp.sum(stats[:, 0, :], axis=0)              # (coutp,)
            cssq = jnp.sum(stats[:, 1, :], axis=0)              # (coutp,)
            mean = csum / M                                     # true-M divisor
            var = jnp.maximum(cssq / M - mean * mean, 0.0)      # guard rounding
            gamma_p = jnp.pad(gamma, (0, coutp - cout))
            beta_p = jnp.pad(beta, (0, coutp - cout))
            scale = gamma_p * jax.lax.rsqrt(var + BN_EPS)
            shift = beta_p - mean * scale
            y = bn_lrelu(y_bf16,
                         scale.reshape(1, coutp).astype(jnp.float32),
                         shift.reshape(1, coutp).astype(jnp.float32),
                         tm)
        else:
            bias_p = jnp.pad(b.reshape(1, cout), ((0, 0), (0, coutp - cout)))
            y = conv_bias(patches_p, wmat_p, bias_p, tm)

        y = y[:M, :cout]                        # strip M and channel padding
        x = y.reshape(n, ho, wo, cout)          # back to NHWC

    # with_flatten=True: PyTorch flattens NCHW -> [N, C*H*W]
    out = jnp.transpose(x, (0, 3, 1, 2)).reshape(N, -1).astype(jnp.float32)
    return out


if __name__ == "__main__":
    key = jax.random.PRNGKey(0)
    kx, kd = jax.random.split(key, 2)
    N, H, W = 2, 16, 16
    x = jax.random.normal(kx, (N, 1, H, W), jnp.float32)
    digits = jax.random.randint(kd, (N,), 0, NB_DIGITS)
    params = init_params(jax.random.PRNGKey(42))

    out = conditional_discriminator(x, digits, params)
    out = jax.block_until_ready(out)
    assert out.shape == (N, 2), out.shape
    assert jnp.all(jnp.isfinite(out))
    print("KERNEL_OK")
</pallas_src>

<mosaic_0001>
module attributes {stable_mosaic.version = 11 : i64} {
  func.func @_matmul_stats_kernel(%arg0: i32, %arg1: memref<176x176xbf16, #tpu.memory_space<vmem>>, %arg2: memref<176x128xbf16, #tpu.memory_space<vmem>>, %arg3: memref<176x128xbf16, #tpu.memory_space<vmem>>, %arg4: memref<8x128xf32, #tpu.memory_space<vmem>>) attributes {dimension_semantics = [#tpu.dimension_semantics<parallel>], iteration_bounds = array<i64: 1>, scalar_prefetch = 0 : i64, scratch_operands = 0 : i64, tpu.core_type = #tpu.core_type<tc>, window_params = [{transform_indices = @transform_0, window_bounds = array<i64: 176, 176>}, {pipeline_mode = #tpu.pipeline_mode<synchronous>, transform_indices = @transform_1, window_bounds = array<i64: 176, 128>}, {transform_indices = @transform_2, window_bounds = array<i64: 176, 128>}, {transform_indices = @transform_3, window_bounds = array<i64: 8, 128>}]} {
    %c0 = arith.constant 0 : index
    %c0_0 = arith.constant 0 : index
    %0 = vector.load %arg1[%c0, %c0_0] : memref<176x176xbf16, #tpu.memory_space<vmem>>, vector<176x176xbf16>
    %c0_1 = arith.constant 0 : index
    %c0_2 = arith.constant 0 : index
    %1 = vector.load %arg2[%c0_1, %c0_2] : memref<176x128xbf16, #tpu.memory_space<vmem>>, vector<176x128xbf16>
    %cst = arith.constant dense<0.000000e+00> : vector<176x128xf32>
    %2 = tpu.matmul %0, %1, %cst {dimension_numbers = #tpu.dot_dimension_numbers<[1], [0], [0], [1], [0, 0, 1, 1], [], []>} : vector<176x176xbf16>, vector<176x128xbf16>, vector<176x128xf32> -> vector<176x128xf32>
    %3 = arith.truncf %2 : vector<176x128xf32> to vector<176x128xbf16>
    %c0_3 = arith.constant 0 : index
    %c0_4 = arith.constant 0 : index
    %4 = vector.load %arg3[%c0_3, %c0_4] : memref<176x128xbf16, #tpu.memory_space<vmem>>, vector<176x128xbf16>
    tpu.vector_store %arg3[%c0_3, %c0_4], %3 {strides = array<i32>} : memref<176x128xbf16, #tpu.memory_space<vmem>>, vector<176x128xbf16>,
    %cst_5 = arith.constant dense<0.000000e+00> : vector<128xf32>
    %5 = vector.multi_reduction <add>, %2, %cst_5 [0] : vector<176x128xf32> to vector<128xf32>
    %6 = vector.shape_cast %5 : vector<128xf32> to vector<1x128xf32>
    %7 = arith.mulf %2, %2 : vector<176x128xf32>
    %cst_6 = arith.constant dense<0.000000e+00> : vector<128xf32>
    %8 = vector.multi_reduction <add>, %7, %cst_6 [0] : vector<176x128xf32> to vector<128xf32>
    %9 = vector.shape_cast %8 : vector<128xf32> to vector<1x128xf32>
    %10 = tpu.iota {dimensions = array<i32: 0>} : vector<8x128xi32>
    %c0_i32 = arith.constant 0 : i32
    %11 = vector.broadcast %c0_i32 : i32 to vector<8x128xi32>
    %12 = arith.cmpi eq, %10, %11 : vector<8x128xi32>
    %cst_7 = arith.constant 0.000000e+00 : f32
    %13 = vector.shape_cast %6 : vector<1x128xf32> to vector<1x128xf32>
    %14 = vector.broadcast %13 : vector<1x128xf32> to vector<8x128xf32>
    %15 = vector.broadcast %cst_7 : f32 to vector<8x128xf32>
    %16 = arith.select %12, %14, %15 : vector<8x128xi1>, vector<8x128xf32>
    %c1_i32 = arith.constant 1 : i32
    %17 = vector.broadcast %c1_i32 : i32 to vector<8x128xi32>
    %18 = arith.cmpi eq, %10, %17 : vector<8x128xi32>
    %cst_8 = arith.constant 0.000000e+00 : f32
    %19 = vector.shape_cast %9 : vector<1x128xf32> to vector<1x128xf32>
    %20 = vector.broadcast %19 : vector<1x128xf32> to vector<8x128xf32>
    %21 = vector.broadcast %cst_8 : f32 to vector<8x128xf32>
    %22 = arith.select %18, %20, %21 : vector<8x128xi1>, vector<8x128xf32>
    %23 = arith.addf %16, %22 : vector<8x128xf32>
    %c0_9 = arith.constant 0 : index
    %c0_10 = arith.constant 0 : index
    %24 = vector.load %arg4[%c0_9, %c0_10] : memref<8x128xf32, #tpu.memory_space<vmem>>, vector<8x128xf32>
    tpu.vector_store %arg4[%c0_9, %c0_10], %23 {strides = array<i32>} : memref<8x128xf32, #tpu.memory_space<vmem>>, vector<8x128xf32>,
    return
  }
  func.func @transform_0(%arg0: i32) -> (i32, i32) {
    %c0_i32 = arith.constant 0 : i32
    %c0_i32_0 = arith.constant 0 : i32
    return %arg0, %c0_i32 : i32, i32
  }
  func.func @transform_1(%arg0: i32) -> (i32, i32) {
    %c0_i32 = arith.constant 0 : i32
    %c0_i32_0 = arith.constant 0 : i32
    %c0_i32_1 = arith.constant 0 : i32
    return %c0_i32, %c0_i32_0 : i32, i32
  }
  func.func @transform_2(%arg0: i32) -> (i32, i32) {
    %c0_i32 = arith.constant 0 : i32
    %c0_i32_0 = arith.constant 0 : i32
    return %arg0, %c0_i32 : i32, i32
  }
  func.func @transform_3(%arg0: i32) -> (i32, i32) {
    %c0_i32 = arith.constant 0 : i32
    %c0_i32_0 = arith.constant 0 : i32
    return %arg0, %c0_i32 : i32, i32
  }
}

</mosaic_0001>

<llo_original>
// kernel: tpu_custom_call.1
$region0: #{tpu_custom_call.1}
  #allocation0 [shape = 'u32[]', space=smem, size = 0x4, offset = 0x4, fixed_abs, tag = 'smem constant byte address 0x4 - core index']
  #allocation1 [shape = 'u32[144,128]{1,0:T(1,128)}', space=vmem, size = 0x12000, scoped, tag = 'internal scratch']
  %s0 = inlined_call_operand.hbm [shape: bf16[176,176], index: 0, kind: input, shape index: {}]
  %s1 = inlined_call_operand.hbm [shape: bf16[176,128], index: 1, kind: input, shape index: {}]
  %s2 = inlined_call_operand.hbm [shape: bf16[176,128], index: 2, kind: output, shape index: {0}]
  %s3 = inlined_call_operand.hbm [shape: f32[8,128], index: 3, kind: output, shape index: {1}]
  %4 = xla_tuple %s2, %s3
  %s5 = sld [smem:[#allocation0]]
  $region34: #{tpu_custom_call.1} parent=0
    _
  %s7 = ssub.s32 1, %s5
  %s8 = scalar_select 0, %s7, %s5
  $region1: #{tpu_custom_call.1} parent=0
    #allocation2 [shape = 'u8[90112]{0}', space=vmem, size = 0x16000, scoped, tag = 'input window, operand 0, single buffered']
    #allocation3 [shape = 's32[1]{0}', space=sflag, size = 0x4, scoped, tag = 'scoped memory for tpu_custom_call.1']
    #allocation4 [shape = 's32[1]{0}', space=sflag, size = 0x4, scoped, tag = 'scoped memory for tpu_custom_call.1']
    #allocation5 [shape = 'u8[45056]{0}', space=vmem, size = 0xb000, scoped, tag = 'input window, operand 1, single buffered']
    #allocation6 [shape = 's32[1]{0}', space=sflag, size = 0x4, scoped, tag = 'scoped memory for tpu_custom_call.1']
    #allocation7 [shape = 'u8[45056]{0}', space=vmem, size = 0xb000, scoped, tag = 'output window, operand 0, single buffered']
    #allocation8 [shape = 'u8[4096]{0}', space=vmem, size = 0x1000, scoped, tag = 'output window, operand 1, single buffered']
    #allocation9 [shape = 's32[1]{0}', space=sflag, size = 0x4, scoped, tag = 'scoped memory for tpu_custom_call.1']
    %9 = vsyncpa [#allocation3], 0
    %10 = vsyncpa [#allocation6], 0
    %11 = vsyncpa [#allocation4], 0
    %12 = vsyncpa [#allocation9], 0
    // Predicated region
    $region2: #{tpu_custom_call.1} parent=1 // pred_check
      _
    $region3: #{tpu_custom_call.1} parent=1 // pred_check_branch
      %14 = sbr.rel (0) target = $region5
    $region4: #{tpu_custom_call.1} parent=1 // pred_region
      %s16 = ssub.s32 2816, 2816
      %17 = vsyncadd [#allocation3], %s16
      %s18 = sshll.u32 [#allocation2], 4
      %s19 = int_to_ptr.vmem [resolvable:$true] %s18
      %24 = dma.hbm_to_vmem [thread:$0]  %s0, 2816, %s19, [#allocation3], 128, 128, 8
    $region5: #{tpu_custom_call.1} parent=1 // pred_fallthru
      _
    // Predicated region
    $region6: #{tpu_custom_call.1} parent=1 // pred_check
      _
    $region7: #{tpu_custom_call.1} parent=1 // pred_check_branch
      %26 = sbr.rel (0) target = $region9
    $region8: #{tpu_custom_call.1} parent=1 // pred_region
      %s28 = ssub.s32 1408, 1408
      %29 = vsyncadd [#allocation6], %s28
      %s30 = sshll.u32 [#allocation5], 4
      %s31 = int_to_ptr.vmem [resolvable:$true] %s30
      %36 = dma.hbm_to_vmem [thread:$0]  %s1, 1408, %s31, [#allocation6], 64, 64, 4
    $region9: #{tpu_custom_call.1} parent=1 // pred_fallthru
      _
    // Predicated region
    $region10: #{tpu_custom_call.1} parent=1 // pred_check
      _
    $region11: #{tpu_custom_call.1} parent=1 // pred_check_branch
      %38 = sbr.rel (0) target = $region13
    $region12: #{tpu_custom_call.1} parent=1 // pred_region
      %39 = dma.done [#allocation3], 2816
    $region13: #{tpu_custom_call.1} parent=1 // pred_fallthru
      _
    // Predicated region
    $region14: #{tpu_custom_call.1} parent=1 // pred_check
      _
    $region15: #{tpu_custom_call.1} parent=1 // pred_check_branch
      %41 = sbr.rel (0) target = $region17
    $region16: #{tpu_custom_call.1} parent=1 // pred_region
      %42 = dma.done [#allocation6], 1408
    $region17: #{tpu_custom_call.1} parent=1 // pred_fallthru
      _
    %v44 = vld [vmem:[#allocation2] sm:$0xff]
    %v45 = vld [vmem:[#allocation2 + $0x8] sm:$0xff]
    %v46 = vld [vmem:[#allocation2 + $0x10] sm:$0xff]
    %v47 = vld [vmem:[#allocation2 + $0x18] sm:$0xff]
    %v48 = vld [vmem:[#allocation2 + $0x20] sm:$0xff]
    %v49 = vld [vmem:[#allocation2 + $0x28] sm:$0xff]
    %v50 = vld [vmem:[#allocation2 + $0x30] sm:$0xff]
    %v51 = vld [vmem:[#allocation2 + $0x38] sm:$0xff]
    %v52 = vld [vmem:[#allocation2 + $0x40] sm:$0xff]
    %v53 = vld [vmem:[#allocation2 + $0x48] sm:$0xff]
    %v54 = vld [vmem:[#allocation2 + $0x50] sm:$0xff]
    %v55 = vld [vmem:[#allocation2 + $0x58] sm:$0xff]
    %v56 = vld [vmem:[#allocation2 + $0x60] sm:$0xff]
    %v57 = vld [vmem:[#allocation2 + $0x68] sm:$0xff]
    %v58 = vld [vmem:[#allocation2 + $0x70] sm:$0xff]
    %v59 = vld [vmem:[#allocation2 + $0x78] sm:$0xff]
    %v60 = vld [vmem:[#allocation2 + $0x80] sm:$0xff]
    %v61 = vld [vmem:[#allocation2 + $0x88] sm:$0xff]
    %v62 = vld [vmem:[#allocation2 + $0x90] sm:$0xff]
    %v63 = vld [vmem:[#allocation2 + $0x98] sm:$0xff]
    %v64 = vld [vmem:[#allocation2 + $0xa0] sm:$0xff]
    %v65 = vld [vmem:[#allocation2 + $0xa8] sm:$0xff]
    %v66 = vld [vmem:[#allocation5] sm:$0xf]
    %v67 = vld [vmem:[#allocation5 + $0x4] sm:$0xf]
    %v68 = vld [vmem:[#allocation5 + $0x8] sm:$0xf]
    %v69 = vld [vmem:[#allocation5 + $0xc] sm:$0xf]
    %v70 = vld [vmem:[#allocation5 + $0x10] sm:$0xf]
    %v71 = vld [vmem:[#allocation5 + $0x14] sm:$0xf]
    %v72 = vld [vmem:[#allocation5 + $0x18] sm:$0xf]
    %v73 = vld [vmem:[#allocation5 + $0x1c] sm:$0xf]
    %v74 = vld [vmem:[#allocation5 + $0x20] sm:$0xf]
    %v75 = vld [vmem:[#allocation5 + $0x24] sm:$0xf]
    %v76 = vld [vmem:[#allocation5 + $0x28] sm:$0xf]
    %v77 = vld [vmem:[#allocation5 + $0x2c] sm:$0xf]
    %v78 = vld [vmem:[#allocation5 + $0x30] sm:$0xf]
    %v79 = vld [vmem:[#allocation5 + $0x34] sm:$0xf]
    %v80 = vld [vmem:[#allocation5 + $0x38] sm:$0xf]
    %v81 = vld [vmem:[#allocation5 + $0x3c] sm:$0xf]
    %v82 = vld [vmem:[#allocation5 + $0x40] sm:$0xf]
    %v83 = vld [vmem:[#allocation5 + $0x44] sm:$0xf]
    %v84 = vld [vmem:[#allocation5 + $0x48] sm:$0xf]
    %v85 = vld [vmem:[#allocation5 + $0x4c] sm:$0xf]
    %v86 = vld [vmem:[#allocation5 + $0x50] sm:$0xf]
    %v87 = vld [vmem:[#allocation5 + $0x54] sm:$0xf]
    %v110 = vunpack.c.l.b16 %v44
    %v111 = vunpack.c.h.b16 %v44
    %v112 = vunpack.c.l.b16 %v45
    %v113 = vunpack.c.h.b16 %v45
    %v114 = vunpack.c.l.b16 %v46
    %v115 = vunpack.c.h.b16 %v46
    %v116 = vunpack.c.l.b16 %v47
    %v117 = vunpack.c.h.b16 %v47
    %v118 = vunpack.c.l.b16 %v48
    %v119 = vunpack.c.h.b16 %v48
    %v120 = vunpack.c.l.b16 %v49
    %v121 = vunpack.c.h.b16 %v49
    %v122 = vunpack.c.l.b16 %v50
    %v123 = vunpack.c.h.b16 %v50
    %v124 = vunpack.c.l.b16 %v51
    %v125 = vunpack.c.h.b16 %v51
    %v126 = vunpack.c.l.b16 %v52
    %v127 = vunpack.c.h.b16 %v52
    %v128 = vunpack.c.l.b16 %v53
    %v129 = vunpack.c.h.b16 %v53
    %v130 = vunpack.c.l.b16 %v54
    %v131 = vunpack.c.h.b16 %v54
    %v132 = vunpack.c.l.b16 %v55
    %v133 = vunpack.c.h.b16 %v55
    %v134 = vunpack.c.l.b16 %v56
    %v135 = vunpack.c.h.b16 %v56
    %v136 = vunpack.c.l.b16 %v57
    %v137 = vunpack.c.h.b16 %v57
    %v138 = vunpack.c.l.b16 %v58
    %v139 = vunpack.c.h.b16 %v58
    %v140 = vunpack.c.l.b16 %v59
    %v141 = vunpack.c.h.b16 %v59
    %v142 = vunpack.c.l.b16 %v60
    %v143 = vunpack.c.h.b16 %v60
    %v144 = vunpack.c.l.b16 %v61
    %v145 = vunpack.c.h.b16 %v61
    %v146 = vunpack.c.l.b16 %v62
    %v147 = vunpack.c.h.b16 %v62
    %v148 = vunpack.c.l.b16 %v63
    %v149 = vunpack.c.h.b16 %v63
    %v150 = vunpack.c.l.b16 %v64
    %v151 = vunpack.c.h.b16 %v64
    %v152 = vunpack.c.l.b16 %v65
    %v153 = vunpack.c.h.b16 %v65
    %v154 = vpack.c.b16 %v112, %v110
    %v155 = vpack.c.b16 %v113, %v111
    %v156 = vpack.c.b16 %v116, %v114
    %v157 = vpack.c.b16 %v117, %v115
    %v158 = vpack.c.b16 %v120, %v118
    %v159 = vpack.c.b16 %v121, %v119
    %v160 = vpack.c.b16 %v124, %v122
    %v161 = vpack.c.b16 %v125, %v123
    %v162 = vpack.c.b16 %v128, %v126
    %v163 = vpack.c.b16 %v129, %v127
    %v164 = vpack.c.b16 %v132, %v130
    %v165 = vpack.c.b16 %v133, %v131
    %v166 = vpack.c.b16 %v136, %v134
    %v167 = vpack.c.b16 %v137, %v135
    %v168 = vpack.c.b16 %v140, %v138
    %v169 = vpack.c.b16 %v141, %v139
    %v170 = vpack.c.b16 %v144, %v142
    %v171 = vpack.c.b16 %v145, %v143
    %v172 = vpack.c.b16 %v148, %v146
    %v173 = vpack.c.b16 %v149, %v147
    %v174 = vpack.c.b16 %v152, %v150
    %v175 = vpack.c.b16 %v153, %v151
    %v209 = vunpack.c.l.b16 %v66
    %v210 = vunpack.c.l.b16 %v67
    %v211 = vunpack.c.l.b16 %v68
    %v212 = vunpack.c.l.b16 %v69
    %v213 = vunpack.c.l.b16 %v70
    %v214 = vunpack.c.l.b16 %v71
    %v215 = vunpack.c.l.b16 %v72
    %v216 = vunpack.c.l.b16 %v73
    %v217 = vunpack.c.l.b16 %v74
    %v218 = vunpack.c.l.b16 %v75
    %v219 = vunpack.c.l.b16 %v76
    %v220 = vunpack.c.l.b16 %v77
    %v221 = vunpack.c.l.b16 %v78
    %v222 = vunpack.c.l.b16 %v79
    %v223 = vunpack.c.l.b16 %v80
    %v224 = vunpack.c.l.b16 %v81
    %v225 = vunpack.c.l.b16 %v82
    %v226 = vunpack.c.l.b16 %v83
    %v227 = vunpack.c.l.b16 %v84
    %v228 = vunpack.c.l.b16 %v85
    %v229 = vunpack.c.l.b16 %v86
    %v230 = vunpack.c.l.b16 %v87
    %v231 = vpack.c.b16 %v210, %v209
    %v232 = vpack.c.b16 %v212, %v211
    %v233 = vpack.c.b16 %v214, %v213
    %v234 = vpack.c.b16 %v216, %v215
    %v235 = vpack.c.b16 %v218, %v217
    %v236 = vpack.c.b16 %v220, %v219
    %v237 = vpack.c.b16 %v222, %v221
    %v238 = vpack.c.b16 %v224, %v223
    %v239 = vpack.c.b16 %v226, %v225
    %v240 = vpack.c.b16 %v228, %v227
    %v241 = vpack.c.b16 %v230, %v229
    %vm253 = vcmask 392192
    %v255 = vsel %vm253, %v155, 0
    %v258 = vsel %vm253, %v157, 0
    %v261 = vsel %vm253, %v159, 0
    %v264 = vsel %vm253, %v161, 0
    %v267 = vsel %vm253, %v163, 0
    %v270 = vsel %vm253, %v165, 0
    %v273 = vsel %vm253, %v167, 0
    %v276 = vsel %vm253, %v169, 0
    %v279 = vsel %vm253, %v171, 0
    %v282 = vsel %vm253, %v173, 0
    %v285 = vsel %vm253, %v175, 0
    %287 = vmatprep.subr.bf16.mxu0 0
    %288 = vmatpush1.bf16.msra.mxu0 %v231
    %289 = vmatprep.subr.bf16.mxu0 0
    %290 = vmatpush1.bf16.msra.mxu0 %v232
    %291 = vmatprep.subr.bf16.mxu0 0
    %292 = vmatpush1.bf16.msra.mxu0 %v233
    %293 = vmatprep.subr.bf16.mxu0 0
    %294 = vmatpush1.bf16.msra.mxu0 %v234
    %295 = vmatprep.subr.bf16.mxu0 0
    %296 = vmatpush1.bf16.msra.mxu0 %v235
    %297 = vmatprep.subr.bf16.mxu0 0
    %298 = vmatpush1.bf16.msra.mxu0 %v236
    %299 = vmatprep.subr.bf16.mxu0 0
    %300 = vmatpush1.bf16.msra.mxu0 %v237
    %301 = vmatprep.subr.bf16.mxu0 0
    %302 = vmatpush1.bf16.msra.mxu0 %v238
    %303 = vmatprep.subr.bf16.mxu0 0
    %304 = vmatpush1.bf16.msra.mxu0 %v239
    %305 = vmatprep.subr.bf16.mxu0 0
    %306 = vmatpush1.bf16.msra.mxu0 %v240
    %307 = vmatprep.subr.bf16.mxu0 0
    %308 = vmatpush1.bf16.msra.mxu0 %v241
    %309 = vmatprep.subr.bf16.mxu0 0
    %310 = vmatpush1.bf16.msra.mxu0 0
    %311 = vmatprep.subr.bf16.mxu0 0
    %312 = vmatpush1.bf16.msra.mxu0 0
    %313 = vmatprep.subr.bf16.mxu0 0
    %314 = vmatpush1.bf16.msra.mxu0 0
    %315 = vmatprep.subr.bf16.mxu0 0
    %316 = vmatpush1.bf16.msra.mxu0 0
    %317 = vmatprep.subr.bf16.mxu0 0
    %318 = vmatpush1.bf16.msra.mxu0 0
    %319 = vmatprep.mubr.bf16.mxu0 %v255
    %320 = vmatmul.mubr.bf16.gmra.mrb[0].mxu0 %v154
    %v321 = vpop.f32.mrb[0].mxu0
    %v322 = vadd.f32 0.0, %v321
    %v323 = vpop.f32.mrb[0].mxu0
    %v324 = vpop.f32.mrb[0].mxu0
    %v325 = vadd.f32 0.0, %v324
    %v326 = vpop.f32.mrb[0].mxu0
    %327 = vmatprep.mubr.bf16.mxu0 %v258
    %328 = vmatmul.mubr.bf16.gmra.mrb[0].mxu0 %v156
    %v329 = vpop.f32.mrb[0].mxu0
    %v330 = vadd.f32 0.0, %v329
    %v331 = vpop.f32.mrb[0].mxu0
    %v332 = vpop.f32.mrb[0].mxu0
    %v333 = vadd.f32 0.0, %v332
    %v334 = vpop.f32.mrb[0].mxu0
    %335 = vmatprep.mubr.bf16.mxu0 %v261
    %336 = vmatmul.mubr.bf16.gmra.mrb[0].mxu0 %v158
    %v337 = vpop.f32.mrb[0].mxu0
    %v338 = vadd.f32 0.0, %v337
    %v339 = vpop.f32.mrb[0].mxu0
    %v340 = vpop.f32.mrb[0].mxu0
    %v341 = vadd.f32 0.0, %v340
    %v342 = vpop.f32.mrb[0].mxu0
    %343 = vmatprep.mubr.bf16.mxu0 %v264
    %344 = vmatmul.mubr.bf16.gmra.mrb[0].mxu0 %v160
    %v345 = vpop.f32.mrb[0].mxu0
    %v346 = vadd.f32 0.0, %v345
    %v347 = vpop.f32.mrb[0].mxu0
    %v348 = vpop.f32.mrb[0].mxu0
    %v349 = vadd.f32 0.0, %v348
    %v350 = vpop.f32.mrb[0].mxu0
    %351 = vmatprep.mubr.bf16.mxu0 %v267
    %352 = vmatmul.mubr.bf16.gmra.mrb[0].mxu0 %v162
    %v353 = vpop.f32.mrb[0].mxu0
    %v354 = vadd.f32 0.0, %v353
    %v355 = vpop.f32.mrb[0].mxu0
    %v356 = vpop.f32.mrb[0].mxu0
    %v357 = vadd.f32 0.0, %v356
    %v358 = vpop.f32.mrb[0].mxu0
    %359 = vmatprep.mubr.bf16.mxu0 %v270
    %360 = vmatmul.mubr.bf16.gmra.mrb[0].mxu0 %v164
    %v361 = vpop.f32.mrb[0].mxu0
    %v362 = vadd.f32 0.0, %v361
    %v363 = vpop.f32.mrb[0].mxu0
    %v364 = vpop.f32.mrb[0].mxu0
    %v365 = vadd.f32 0.0, %v364
    %v366 = vpop.f32.mrb[0].mxu0
    %367 = vmatprep.mubr.bf16.mxu0 %v273
    %368 = vmatmul.mubr.bf16.gmra.mrb[0].mxu0 %v166
    %v369 = vpop.f32.mrb[0].mxu0
    %v370 = vadd.f32 0.0, %v369
    %v371 = vpop.f32.mrb[0].mxu0
    %v372 = vpop.f32.mrb[0].mxu0
    %v373 = vadd.f32 0.0, %v372
    %v374 = vpop.f32.mrb[0].mxu0
    %375 = vmatprep.mubr.bf16.mxu0 %v276
    %376 = vmatmul.mubr.bf16.gmra.mrb[0].mxu0 %v168
    %v377 = vpop.f32.mrb[0].mxu0
    %v378 = vadd.f32 0.0, %v377
    %v379 = vpop.f32.mrb[0].mxu0
    %v380 = vpop.f32.mrb[0].mxu0
    %v381 = vadd.f32 0.0, %v380
    %v382 = vpop.f32.mrb[0].mxu0
    %383 = vmatprep.mubr.bf16.mxu0 %v279
    %384 = vmatmul.mubr.bf16.gmra.mrb[0].mxu0 %v170
    %v385 = vpop.f32.mrb[0].mxu0
    %v386 = vadd.f32 0.0, %v385
    %v387 = vpop.f32.mrb[0].mxu0
    %v388 = vpop.f32.mrb[0].mxu0
    %v389 = vadd.f32 0.0, %v388
    %v390 = vpop.f32.mrb[0].mxu0
    %391 = vmatprep.mubr.bf16.mxu0 %v282
    %392 = vmatmul.mubr.bf16.gmra.mrb[0].mxu0 %v172
    %v393 = vpop.f32.mrb[0].mxu0
    %v394 = vadd.f32 0.0, %v393
    %v395 = vpop.f32.mrb[0].mxu0
    %v396 = vpop.f32.mrb[0].mxu0
    %v397 = vadd.f32 0.0, %v396
    %v398 = vpop.f32.mrb[0].mxu0
    %399 = vmatprep.mubr.bf16.mxu0 %v285
    %400 = vmatmul.mubr.bf16.gmra.mrb[0].mxu0 %v174
    %v401 = vpop.f32.mrb[0].mxu0
    %v402 = vadd.f32 0.0, %v401
    %v403 = vpop.f32.mrb[0].mxu0
    %v404 = vpop.f32.mrb[0].mxu0
    %v405 = vadd.f32 0.0, %v404
    %v406 = vpop.f32.mrb[0].mxu0
    %407 = vdwg.mxu0
    %v408 = vpack.c.bf16 %v325, %v322
    %v409 = vpack.c.bf16 %v333, %v330
    %v410 = vpack.c.bf16 %v341, %v338
    %v411 = vpack.c.bf16 %v349, %v346
    %v412 = vpack.c.bf16 %v357, %v354
    %v413 = vpack.c.bf16 %v365, %v362
    %v414 = vpack.c.bf16 %v373, %v370
    %v415 = vpack.c.bf16 %v381, %v378
    %v416 = vpack.c.bf16 %v389, %v386
    %v417 = vpack.c.bf16 %v397, %v394
    %v418 = vpack.c.bf16 %v405, %v402
    %v430 = vunpack.c.l.b16 %v408
    %v431 = vunpack.c.h.b16 %v408
    %v432 = vunpack.c.l.b16 %v409
    %v433 = vunpack.c.h.b16 %v409
    %v434 = vunpack.c.l.b16 %v410
    %v435 = vunpack.c.h.b16 %v410
    %v436 = vunpack.c.l.b16 %v411
    %v437 = vunpack.c.h.b16 %v411
    %v438 = vunpack.c.l.b16 %v412
    %v439 = vunpack.c.h.b16 %v412
    %v440 = vunpack.c.l.b16 %v413
    %v441 = vunpack.c.h.b16 %v413
    %v442 = vunpack.c.l.b16 %v414
    %v443 = vunpack.c.h.b16 %v414
    %v444 = vunpack.c.l.b16 %v415
    %v445 = vunpack.c.h.b16 %v415
    %v446 = vunpack.c.l.b16 %v416
    %v447 = vunpack.c.h.b16 %v416
    %v448 = vunpack.c.l.b16 %v417
    %v449 = vunpack.c.h.b16 %v417
    %v450 = vunpack.c.l.b16 %v418
    %v451 = vunpack.c.h.b16 %v418
    %v452 = vpack.c.b16 %v430, %v430
    %v453 = vpack.c.b16 %v431, %v431
    %v454 = vpack.c.b16 %v432, %v432
    %v455 = vpack.c.b16 %v433, %v433
    %v456 = vpack.c.b16 %v434, %v434
    %v457 = vpack.c.b16 %v435, %v435
    %v458 = vpack.c.b16 %v436, %v436
    %v459 = vpack.c.b16 %v437, %v437
    %v460 = vpack.c.b16 %v438, %v438
    %v461 = vpack.c.b16 %v439, %v439
    %v462 = vpack.c.b16 %v440, %v440
    %v463 = vpack.c.b16 %v441, %v441
    %v464 = vpack.c.b16 %v442, %v442
    %v465 = vpack.c.b16 %v443, %v443
    %v466 = vpack.c.b16 %v444, %v444
    %v467 = vpack.c.b16 %v445, %v445
    %v468 = vpack.c.b16 %v446, %v446
    %v469 = vpack.c.b16 %v447, %v447
    %v470 = vpack.c.b16 %v448, %v448
    %v471 = vpack.c.b16 %v449, %v449
    %v472 = vpack.c.b16 %v450, %v450
    %v473 = vpack.c.b16 %v451, %v451
    %496 = vst [vmem:[#allocation7] sm:$0xf] %v452
    %497 = vst [vmem:[#allocation7 + $0x4] sm:$0xf] %v453
    %498 = vst [vmem:[#allocation7 + $0x8] sm:$0xf] %v454
    %499 = vst [vmem:[#allocation7 + $0xc] sm:$0xf] %v455
    %500 = vst [vmem:[#allocation7 + $0x10] sm:$0xf] %v456
    %501 = vst [vmem:[#allocation7 + $0x14] sm:$0xf] %v457
    %502 = vst [vmem:[#allocation7 + $0x18] sm:$0xf] %v458
    %503 = vst [vmem:[#allocation7 + $0x1c] sm:$0xf] %v459
    %504 = vst [vmem:[#allocation7 + $0x20] sm:$0xf] %v460
    %505 = vst [vmem:[#allocation7 + $0x24] sm:$0xf] %v461
    %506 = vst [vmem:[#allocation7 + $0x28] sm:$0xf] %v462
    %507 = vst [vmem:[#allocation7 + $0x2c] sm:$0xf] %v463
    %508 = vst [vmem:[#allocation7 + $0x30] sm:$0xf] %v464
    %509 = vst [vmem:[#allocation7 + $0x34] sm:$0xf] %v465
    %510 = vst [vmem:[#allocation7 + $0x38] sm:$0xf] %v466
    %511 = vst [vmem:[#allocation7 + $0x3c] sm:$0xf] %v467
    %512 = vst [vmem:[#allocation7 + $0x40] sm:$0xf] %v468
    %513 = vst [vmem:[#allocation7 + $0x44] sm:$0xf] %v469
    %514 = vst [vmem:[#allocation7 + $0x48] sm:$0xf] %v470
    %515 = vst [vmem:[#allocation7 + $0x4c] sm:$0xf] %v471
    %516 = vst [vmem:[#allocation7 + $0x50] sm:$0xf] %v472
    %517 = vst [vmem:[#allocation7 + $0x54] sm:$0xf] %v473
    %v518 = vadd.f32 %v322, %v325
    %v519 = vadd.f32 %v518, %v330
    %v520 = vadd.f32 %v519, %v333
    %v521 = vadd.f32 %v520, %v338
    %v522 = vadd.f32 %v521, %v341
    %v523 = vadd.f32 %v522, %v346
    %v524 = vadd.f32 %v523, %v349
    %v525 = vadd.f32 %v524, %v354
    %v526 = vadd.f32 %v525, %v357
    %v527 = vadd.f32 %v526, %v362
    %v528 = vadd.f32 %v527, %v365
    %v529 = vadd.f32 %v528, %v370
    %v530 = vadd.f32 %v529, %v373
    %v531 = vadd.f32 %v530, %v378
    %v532 = vadd.f32 %v531, %v381
    %v533 = vadd.f32 %v532, %v386
    %v534 = vadd.f32 %v533, %v389
    %v535 = vadd.f32 %v534, %v394
    %v536 = vadd.f32 %v535, %v397
    %v537 = vadd.f32 %v536, %v402
    %v538 = vadd.f32 %v537, %v405
    %v539 = vrot.slane %v538, 4
    %v540 = vadd.f32 %v538, %v539
    %v541 = vrot.slane %v540, 2
    %v542 = vadd.f32 %v540, %v541
    %v543 = vrot.slane %v542, 1
    %v544 = vadd.f32 %v542, %v543
    %v545 = vmul.f32 %v322, %v322
    %v546 = vmul.f32 %v325, %v325
    %v547 = vmul.f32 %v330, %v330
    %v548 = vmul.f32 %v333, %v333
    %v549 = vmul.f32 %v338, %v338
    %v550 = vmul.f32 %v341, %v341
    %v551 = vmul.f32 %v346, %v346
    %v552 = vmul.f32 %v349, %v349
    %v553 = vmul.f32 %v354, %v354
    %v554 = vmul.f32 %v357, %v357
    %v555 = vmul.f32 %v362, %v362
    %v556 = vmul.f32 %v365, %v365
    %v557 = vmul.f32 %v370, %v370
    %v558 = vmul.f32 %v373, %v373
    %v559 = vmul.f32 %v378, %v378
    %v560 = vmul.f32 %v381, %v381
    %v561 = vmul.f32 %v386, %v386
    %v562 = vmul.f32 %v389, %v389
    %v563 = vmul.f32 %v394, %v394
    %v564 = vmul.f32 %v397, %v397
    %v565 = vmul.f32 %v402, %v402
    %v566 = vmul.f32 %v405, %v405
    %v567 = vadd.f32 %v545, %v546
    %v568 = vadd.f32 %v567, %v547
    %v569 = vadd.f32 %v568, %v548
    %v570 = vadd.f32 %v569, %v549
    %v571 = vadd.f32 %v570, %v550
    %v572 = vadd.f32 %v571, %v551
    %v573 = vadd.f32 %v572, %v552
    %v574 = vadd.f32 %v573, %v553
    %v575 = vadd.f32 %v574, %v554
    %v576 = vadd.f32 %v575, %v555
    %v577 = vadd.f32 %v576, %v556
    %v578 = vadd.f32 %v577, %v557
    %v579 = vadd.f32 %v578, %v558
    %v580 = vadd.f32 %v579, %v559
    %v581 = vadd.f32 %v580, %v560
    %v582 = vadd.f32 %v581, %v561
    %v583 = vadd.f32 %v582, %v562
    %v584 = vadd.f32 %v583, %v563
    %v585 = vadd.f32 %v584, %v564
    %v586 = vadd.f32 %v585, %v565
    %v587 = vadd.f32 %v586, %v566
    %v588 = vrot.slane %v587, 4
    %v589 = vadd.f32 %v587, %v588
    %v590 = vrot.slane %v589, 2
    %v591 = vadd.f32 %v589, %v590
    %v592 = vrot.slane %v591, 1
    %v593 = vadd.f32 %v591, %v592
    %v594 = vlaneseq
    %v595 = vshrl.u32 %v594, 7
    %vm596 = vcmp.eq.s32.totalorder %v595, 0
    %v597 = vsel %vm596, %v544, 0.0
    %vm598 = vcmp.eq.s32.totalorder %v595, 1
    %v599 = vsel %vm598, %v593, 0.0
    %v600 = vadd.f32 %v597, %v599
    %601 = vst [vmem:[#allocation8] sm:$0xff] %v600
    // Predicated region
    $region18: #{tpu_custom_call.1} parent=1 // pred_check
      _
    $region19: #{tpu_custom_call.1} parent=1 // pred_check_branch
      %603 = sbr.rel (0) target = $region21
    $region20: #{tpu_custom_call.1} parent=1 // pred_region
      %s605 = ssub.s32 1408, 1408
      %606 = vsyncadd [#allocation4], %s605
      %s607 = sshll.u32 [#allocation7], 4
      %s608 = int_to_ptr.vmem [resolvable:$true] %s607
      %613 = dma.vmem_to_hbm [thread:$0]  %s608, 1408, %s2, [#allocation4], 64, 64, 4
    $region21: #{tpu_custom_call.1} parent=1 // pred_fallthru
      _
    // Predicated region
    $region22: #{tpu_custom_call.1} parent=1 // pred_check
      _
    $region23: #{tpu_custom_call.1} parent=1 // pred_check_branch
      %615 = sbr.rel (0) target = $region25
    $region24: #{tpu_custom_call.1} parent=1 // pred_region
      %s617 = ssub.s32 128, 128
      %618 = vsyncadd [#allocation9], %s617
      %s620 = sshll.u32 [#allocation8], 4
      %s621 = int_to_ptr.vmem [resolvable:$true] %s620
      %623 = dma.vmem_to_hbm [thread:$0]  %s621, 128, %s3, [#allocation9]
    $region25: #{tpu_custom_call.1} parent=1 // pred_fallthru
      _
    // Predicated region
    $region26: #{tpu_custom_call.1} parent=1 // pred_check
      _
    $region27: #{tpu_custom_call.1} parent=1 // pred_check_branch
      %625 = sbr.rel (0) target = $region29
    $region28: #{tpu_custom_call.1} parent=1 // pred_region
      %626 = dma.done [#allocation4], 1408
    $region29: #{tpu_custom_call.1} parent=1 // pred_fallthru
      _
    // Predicated region
    $region30: #{tpu_custom_call.1} parent=1 // pred_check
      _
    $region31: #{tpu_custom_call.1} parent=1 // pred_check_branch
      %628 = sbr.rel (0) target = $region33
    $region32: #{tpu_custom_call.1} parent=1 // pred_region
      %629 = dma.done [#allocation9], 128
    $region33: #{tpu_custom_call.1} parent=1 // pred_fallthru
      _
    %630 = vsyncpa [#allocation3], 1
    %631 = vsyncpa [#allocation6], 1
    %632 = vsyncpa [#allocation4], 1
    %633 = vsyncpa [#allocation9], 1

</llo_original>
